<compile_context>
chip_gen: v5e
topology: v5e:2x2
jax: 0.10.0
libtpu: 0.0.40
codegen_flags: <defaults>
</compile_context>

<pallas_src>
import functools

import jax
import jax.numpy as jnp
from jax.experimental import pallas as pl
from jax.experimental.pallas import tpu as pltpu


def _align(n, a):
    return (n + a - 1) // a * a


def _pack(sections, width, dtype, row_align):
    """Pack a list of (name, 2-D array) row-wise into a single [R, width] array.

    Each section starts at a `row_align`-aligned row offset (16 for bf16 so static
    slices start on a (16,128) VMEM tile boundary, 8 for f32).  Unused rows/lanes
    are zero.  Returns (packed_array, {name: row_offset}).
    """
    offs, bufs, cur = {}, [], 0
    for name, arr in sections:
        offs[name] = cur
        r = _align(arr.shape[0], row_align)
        buf = jnp.zeros((r, width), dtype)
        buf = buf.at[: arr.shape[0], : arr.shape[1]].set(arr.astype(dtype))
        bufs.append(buf)
        cur += r
    return jnp.concatenate(bufs, axis=0), offs


def net_kernel(a_ref, h0_ref, m_ref, v_ref, out_ref, *,
               n_layers, GPB, Nb, hidden, H1, H2, mo, vo):
    """One grid block = GPB graphs (Nb nodes each) of the batch, fully VMEM-resident."""
    a_bf = a_ref[...]                  # [Nblk, Nblk] bf16 block-diag adjacency (exact small counts)
    h_bf = h0_ref[...]                 # [Nblk, hidden] bf16: layer-0 (x @ W1*scale + b1*scale), host-folded
    x_f = None
    x_bf = None
    for l in range(n_layers):          # static unroll; n_layers is small
        if l > 0:
            # W1^T with the BN scale folded into its columns (host-side); bias likewise scaled.
            w1 = m_ref[mo["w1"] + (l - 1) * hidden:mo["w1"] + l * hidden, 0:hidden]   # bf16 [hidden,hidden]
            b1 = v_ref[vo["b1s"] + (l - 1):vo["b1s"] + l, 0:hidden]                   # f32  [1,hidden]
            h_bf = (jnp.dot(x_bf, w1, preferred_element_type=jnp.float32) + b1).astype(jnp.bfloat16)
        shift = v_ref[vo["bnshift"] + l:vo["bnshift"] + l + 1, 0:hidden]              # [1,hidden]
        # GCN "sum" branch aggregation as one dense MXU matmul; BN(inference) is the +shift.
        agg = jnp.dot(a_bf, h_bf, preferred_element_type=jnp.float32)                 # [Nblk,hidden] f32
        x_f = jnp.maximum(agg + shift, 0.0)
        # TODO(synk): F.dropout is identity in eval mode; training-mode RNG dropout not emulated.
        x_bf = x_f.astype(jnp.bfloat16)

    # global_add_pool: graphs are contiguous Nb-row chunks -> sublane-block sums (XLU/VPU),
    # avoiding an MXU fill/drain round trip for a GPB-row matmul.
    pooled = jnp.concatenate(
        [jnp.sum(x_f[g * Nb:(g + 1) * Nb, :], axis=0, keepdims=True) for g in range(GPB)],
        axis=0)                                                                        # [GPB,hidden] f32

    # MLP head (50/25 zero-padded to H1/H2; ReLU preserves the zero padding).
    w3 = m_ref[mo["w3"]:mo["w3"] + hidden, 0:H1]
    b3 = v_ref[vo["b3"]:vo["b3"] + 1, 0:H1]
    h1 = jnp.maximum(jnp.dot(pooled.astype(jnp.bfloat16), w3,
                             preferred_element_type=jnp.float32) + b3, 0.0)            # [GPB,H1]
    w4 = m_ref[mo["w4"]:mo["w4"] + H1, 0:H2]
    b4 = v_ref[vo["b4"]:vo["b4"] + 1, 0:H2]
    h2 = jnp.maximum(jnp.dot(h1.astype(jnp.bfloat16), w4,
                             preferred_element_type=jnp.float32) + b4, 0.0)            # [GPB,H2]
    # Final Linear(25 -> 1) as a VPU broadcast-multiply + lane reduce (skips a 1-wide MXU matmul).
    w5 = v_ref[vo["w5"]:vo["w5"] + 1, 0:H2]                                            # [1,H2] f32
    b5 = v_ref[vo["b5"]:vo["b5"] + 1, 0:1]                                             # [1,1]  f32
    out_ref[...] = jnp.sum(h2 * w5, axis=-1, keepdims=True) + b5                       # [GPB,1]


def net_forward_pallas(a_blocks, h0_blocks, m_pack, v_pack, mo, vo, dims):
    B, Nblk, _ = a_blocks.shape
    GPB, hidden = dims["GPB"], dims["hidden"]
    kern = functools.partial(net_kernel, mo=mo, vo=vo, **dims)
    out = pl.pallas_call(
        kern,
        out_shape=jax.ShapeDtypeStruct((B, GPB, 1), jnp.float32),
        grid_spec=pltpu.PrefetchScalarGridSpec(
            num_scalar_prefetch=0,
            grid=(B,),
            in_specs=[
                pl.BlockSpec((None, Nblk, Nblk), lambda b: (b, 0, 0)),     # per-block adjacency
                pl.BlockSpec((None, Nblk, hidden), lambda b: (b, 0, 0)),   # per-block layer-0 h
                pl.BlockSpec(m_pack.shape, lambda b: (0, 0)),              # shared bf16 weights (DMA'd once)
                pl.BlockSpec(v_pack.shape, lambda b: (0, 0)),              # shared f32 affine params
            ],
            out_specs=pl.BlockSpec((None, GPB, 1), lambda b: (b, 0, 0)),
        ),
        compiler_params=pltpu.CompilerParams(
            dimension_semantics=("parallel",)),          # v7x: the 2 TensorCores split the graph blocks
        # TODO(synk): for much larger graphs, tile / sparsify the O(Nblk^2) dense A per block and
        # re-derive the tile against v7x's 64 MiB VMEM (vs 128 MiB on v5e/v6e).
    )(a_blocks, h0_blocks, m_pack, v_pack)
    return out.reshape(B * GPB, 1)


if __name__ == "__main__":
    key = jax.random.PRNGKey(0)
    keys = jax.random.split(key, 12)

    # ----- shapes (a small ZINC-style mini-batch) -----
    emb_dim = 32
    hidden_dim = 32     # == emb_dim so stacked GCNConv layers type-check (needed for n_layers > 1)
    rank_dim = 16       # only feeds the product/attention branch, which is dead in forward
    n_layers = 2
    Nb = 16             # nodes per graph
    GPB = 8             # graphs per grid block -> Nblk = 128 node rows per block (fills MXU rows)
    B = 2               # grid blocks ("parallel" axis)
    Nblk = GPB * Nb     # 128
    G = B * GPB         # 16 graphs
    N = G * Nb          # 256 nodes
    H1, H2 = 64, 32     # lane-padded head widths for 50 / 25

    # ----- synthetic graph batch: G independent bidirectional rings of Nb nodes -----
    node_idx = jax.random.randint(keys[0], (N, 1), 0, 21)               # ZINC-style node type ids, [N,1]
    base = jnp.arange(Nb, dtype=jnp.int32)
    ring_row = jnp.concatenate([base, (base + 1) % Nb])
    ring_col = jnp.concatenate([(base + 1) % Nb, base])
    offs_per_graph = (jnp.arange(G, dtype=jnp.int32) * Nb)[:, None]
    row = (ring_row[None, :] + offs_per_graph).reshape(-1)
    col = (ring_col[None, :] + offs_per_graph).reshape(-1)
    edge_index = jnp.stack([row, col])                                   # [2, E], E = 2*N
    E = edge_index.shape[1]
    edge_attr_idx = jax.random.randint(keys[1], (E,), 0, 4)             # edge type ids, [E]
    batch = jnp.repeat(jnp.arange(G, dtype=jnp.int32), Nb)              # [N]

    # ----- deterministic parameters (shapes from Net.__init__, eval mode) -----
    node_table = 0.1 * jax.random.normal(keys[2], (21, emb_dim), jnp.float32)  # Embedding(21, emb)
    edge_table = 0.1 * jax.random.normal(keys[3], (4, emb_dim), jnp.float32)   # Embedding(4, emb)

    def lin(k, out_f, in_f):
        kw, kb = jax.random.split(k)
        w = 0.1 * jax.random.normal(kw, (out_f, in_f), jnp.float32)
        b = 0.1 * jax.random.normal(kb, (out_f,), jnp.float32)
        return w, b

    eps = 1e-5
    run_mean = jnp.zeros((hidden_dim,), jnp.float32)   # PyTorch BatchNorm defaults
    run_var = jnp.ones((hidden_dim,), jnp.float32)

    w1_l, b1_l, scale_l, bnshift_l = [], [], [], []
    layer_keys = jax.random.split(keys[4], n_layers)
    for l in range(n_layers):
        w1, b1 = lin(layer_keys[l], hidden_dim, emb_dim)         # GCNConv.w1
        gk, bk = jax.random.split(jax.random.fold_in(keys[5], l))
        gamma = 1.0 + 0.1 * jax.random.normal(gk, (hidden_dim,), jnp.float32)
        beta = 0.1 * jax.random.normal(bk, (hidden_dim,), jnp.float32)
        s = gamma / jnp.sqrt(run_var + eps)
        w1_l.append(w1); b1_l.append(b1)
        scale_l.append(s); bnshift_l.append(beta - run_mean * s)
    # NOTE: GCNConv.{w2, v, att1, att2, att_vec, root_emb} and graph_cp_pooling.w never
    # reach the value returned by Net.forward, so they are not instantiated here.

    w3, b3 = lin(keys[6], 50, hidden_dim)
    w4, b4 = lin(keys[7], 25, 50)
    w5, b5 = lin(keys[8], 1, 25)

    # ----- host-side algebraic folds (exact in f32) -----
    # Fold the BN scale into W1's columns and bias:  (xW^T + b)*s == x(W^T*s) + (b*s).
    w1s_l = [w1_l[l].T * scale_l[l][None, :] for l in range(n_layers)]        # [emb, hidden]
    b1s_l = [(b1_l[l] * scale_l[l])[None, :] for l in range(n_layers)]        # [1, hidden]
    # Fold layer-0's scaled W1/b1 into the embedding table: kernel enters layer 0 at `h`.
    table0 = node_table @ w1s_l[0] + b1s_l[0]                                  # [21, hidden]

    # ----- glue (plain JAX): embedding lookups + dense scatter/gather operators -----
    x_emb = node_table[node_idx.squeeze()]          # [N, emb]   (reference input)
    edge_emb = edge_table[edge_attr_idx]            # computed for fidelity; dead in the output
    h0 = table0[node_idx.squeeze()]                 # [N, hidden] kernel layer-0 input
    # scatter_add over `col` of a gather over `row`  ==  dense A @ h
    A = jnp.zeros((N, N), jnp.float32).at[edge_index[1], edge_index[0]].add(1.0)
    # global_add_pool as a one-hot matmul (reference only; kernel pools with sublane-block sums)
    P = jnp.zeros((G, N), jnp.float32).at[batch, jnp.arange(N)].add(1.0)

    # Per-grid-block operands: graphs never share edges across blocks, so A is block-diagonal.
    a_blocks = jnp.stack([A[b * Nblk:(b + 1) * Nblk, b * Nblk:(b + 1) * Nblk]
                          for b in range(B)]).astype(jnp.bfloat16)             # [B, Nblk, Nblk]
    h0_blocks = h0.reshape(B, Nblk, hidden_dim).astype(jnp.bfloat16)           # [B, Nblk, hidden]

    # Lane-pad the MLP head (zero padding preserved by ReLU, killed by w4/w5's zero tails).
    w3t_p = jnp.zeros((hidden_dim, H1), jnp.float32).at[:, :50].set(w3.T)
    b3_p = jnp.zeros((1, H1), jnp.float32).at[:, :50].set(b3[None, :])
    w4t_p = jnp.zeros((H1, H2), jnp.float32).at[:50, :25].set(w4.T)
    b4_p = jnp.zeros((1, H2), jnp.float32).at[:, :25].set(b4[None, :])
    w5_p = jnp.zeros((1, H2), jnp.float32).at[:, :25].set(w5)
    b5_p = b5.reshape(1, 1)

    # ----- coalesce shared weights into two packed arrays (DMA'd once for the whole grid) -----
    W = max(hidden_dim, H1, H2)                                # packed lane width (= 64)
    m_sections = []
    if n_layers > 1:
        m_sections.append(("w1", jnp.concatenate(w1s_l[1:], axis=0)))          # [(L-1)*emb, hidden]
    m_sections += [("w3", w3t_p), ("w4", w4t_p)]
    m_pack, mo = _pack(m_sections, W, jnp.bfloat16, row_align=16)  # 16-row aligned: bf16 tile (16,128)
    v_sections = []
    if n_layers > 1:
        v_sections.append(("b1s", jnp.concatenate(b1s_l[1:], axis=0)))          # [(L-1), hidden]
    v_sections += [("bnshift", jnp.stack(bnshift_l, axis=0)),                   # [L, hidden]
                   ("b3", b3_p), ("b4", b4_p), ("w5", w5_p), ("b5", b5_p)]
    v_pack, vo = _pack(v_sections, W, jnp.float32, row_align=8)

    dims = dict(n_layers=n_layers, GPB=GPB, Nb=Nb, hidden=hidden_dim, H1=H1, H2=H2)

    # ----- run the Pallas kernel -----
    out = net_forward_pallas(a_blocks, h0_blocks, m_pack, v_pack, mo, vo, dims)
    out = jax.block_until_ready(out)

    # ----- pure-JAX f32 reference with the ORIGINAL (unfolded, unpadded) semantics -----
    def reference(x):
        for l in range(n_layers):
            h = x @ w1_l[l].T + b1_l[l][None, :]
            agg = A @ h
            x = jnp.maximum(agg * scale_l[l][None, :] + bnshift_l[l][None, :], 0.0)
        pooled = P @ x
        h1 = jnp.maximum(pooled @ w3.T + b3[None, :], 0.0)
        h2 = jnp.maximum(h1 @ w4.T + b4[None, :], 0.0)
        return h2 @ w5.T + b5[None, :]

    ref = reference(x_emb)
    assert out.shape == (G, 1), out.shape
    # Tolerance accounts for bf16 MXU operands and the intentional bf16 rounding of the
    # intermediate h before the A-aggregation matmul (f32 accumulation throughout).
    assert jnp.allclose(out, ref, rtol=5e-2, atol=5e-2), (out, ref)
    print("KERNEL_OK")
</pallas_src>

<mosaic_0001>
module attributes {stable_mosaic.version = 11 : i64} {
  func.func @net_kernel(%arg0: i32, %arg1: memref<1x128x128xbf16, #tpu.memory_space<vmem>>, %arg2: memref<1x128x32xbf16, #tpu.memory_space<vmem>>, %arg3: memref<128x64xbf16, #tpu.memory_space<vmem>>, %arg4: memref<48x64xf32, #tpu.memory_space<vmem>>, %arg5: memref<1x8x1xf32, #tpu.memory_space<vmem>>) attributes {dimension_semantics = [#tpu.dimension_semantics<parallel>], iteration_bounds = array<i64: 2>, scalar_prefetch = 0 : i64, scratch_operands = 0 : i64, tpu.core_type = #tpu.core_type<tc>, window_params = [{transform_indices = @transform_0, window_bounds = array<i64: 1, 128, 128>}, {transform_indices = @transform_1, window_bounds = array<i64: 1, 128, 32>}, {pipeline_mode = #tpu.pipeline_mode<synchronous>, transform_indices = @transform_2, window_bounds = array<i64: 128, 64>}, {pipeline_mode = #tpu.pipeline_mode<synchronous>, transform_indices = @transform_3, window_bounds = array<i64: 48, 64>}, {transform_indices = @transform_4, window_bounds = array<i64: 1, 8, 1>}]} {
    %c0 = arith.constant 0 : index
    %c0_0 = arith.constant 0 : index
    %c0_1 = arith.constant 0 : index
    %0 = vector.load %arg1[%c0, %c0_0, %c0_1] : memref<1x128x128xbf16, #tpu.memory_space<vmem>>, vector<1x128x128xbf16>
    %1 = vector.shape_cast %0 : vector<1x128x128xbf16> to vector<128x128xbf16>
    %c0_2 = arith.constant 0 : index
    %c0_3 = arith.constant 0 : index
    %c0_4 = arith.constant 0 : index
    %2 = vector.load %arg2[%c0_2, %c0_3, %c0_4] : memref<1x128x32xbf16, #tpu.memory_space<vmem>>, vector<1x128x32xbf16>
    %3 = vector.shape_cast %2 : vector<1x128x32xbf16> to vector<128x32xbf16>
    %c8 = arith.constant 8 : index
    %c0_5 = arith.constant 0 : index
    %4 = vector.load %arg4[%c8, %c0_5] : memref<48x64xf32, #tpu.memory_space<vmem>>, vector<1x32xf32>
    %cst = arith.constant dense<0.000000e+00> : vector<128x32xf32>
    %5 = tpu.matmul %1, %3, %cst {dimension_numbers = #tpu.dot_dimension_numbers<[1], [0], [0], [1], [0, 0, 1, 1], [], []>} : vector<128x128xbf16>, vector<128x32xbf16>, vector<128x32xf32> -> vector<128x32xf32>
    %6 = vector.broadcast %4 : vector<1x32xf32> to vector<128x32xf32>
    %7 = arith.addf %5, %6 : vector<128x32xf32>
    %cst_6 = arith.constant 0.000000e+00 : f32
    %8 = vector.broadcast %cst_6 : f32 to vector<128x32xf32>
    %9 = arith.maximumf %7, %8 : vector<128x32xf32>
    %10 = arith.truncf %9 : vector<128x32xf32> to vector<128x32xbf16>
    %c0_7 = arith.constant 0 : index
    %c0_8 = arith.constant 0 : index
    %11 = vector.load %arg3[%c0_7, %c0_8] : memref<128x64xbf16, #tpu.memory_space<vmem>>, vector<32x32xbf16>
    %c0_9 = arith.constant 0 : index
    %c0_10 = arith.constant 0 : index
    %12 = vector.load %arg4[%c0_9, %c0_10] : memref<48x64xf32, #tpu.memory_space<vmem>>, vector<1x32xf32>
    %cst_11 = arith.constant dense<0.000000e+00> : vector<128x32xf32>
    %13 = tpu.matmul %10, %11, %cst_11 {dimension_numbers = #tpu.dot_dimension_numbers<[1], [0], [0], [1], [0, 0, 1, 1], [], []>} : vector<128x32xbf16>, vector<32x32xbf16>, vector<128x32xf32> -> vector<128x32xf32>
    %14 = vector.broadcast %12 : vector<1x32xf32> to vector<128x32xf32>
    %15 = arith.addf %13, %14 : vector<128x32xf32>
    %16 = arith.truncf %15 : vector<128x32xf32> to vector<128x32xbf16>
    %c9 = arith.constant 9 : index
    %c0_12 = arith.constant 0 : index
    %17 = vector.load %arg4[%c9, %c0_12] : memref<48x64xf32, #tpu.memory_space<vmem>>, vector<1x32xf32>
    %cst_13 = arith.constant dense<0.000000e+00> : vector<128x32xf32>
    %18 = tpu.matmul %1, %16, %cst_13 {dimension_numbers = #tpu.dot_dimension_numbers<[1], [0], [0], [1], [0, 0, 1, 1], [], []>} : vector<128x128xbf16>, vector<128x32xbf16>, vector<128x32xf32> -> vector<128x32xf32>
    %19 = vector.broadcast %17 : vector<1x32xf32> to vector<128x32xf32>
    %20 = arith.addf %18, %19 : vector<128x32xf32>
    %cst_14 = arith.constant 0.000000e+00 : f32
    %21 = vector.broadcast %cst_14 : f32 to vector<128x32xf32>
    %22 = arith.maximumf %20, %21 : vector<128x32xf32>
    %23 = vector.extract_strided_slice %22 {offsets = [0, 0], sizes = [16, 32], strides = [1, 1]} : vector<128x32xf32> to vector<16x32xf32>
    %cst_15 = arith.constant dense<0.000000e+00> : vector<32xf32>
    %24 = vector.multi_reduction <add>, %23, %cst_15 [0] : vector<16x32xf32> to vector<32xf32>
    %25 = vector.shape_cast %24 : vector<32xf32> to vector<1x32xf32>
    %26 = vector.extract_strided_slice %22 {offsets = [16, 0], sizes = [16, 32], strides = [1, 1]} : vector<128x32xf32> to vector<16x32xf32>
    %cst_16 = arith.constant dense<0.000000e+00> : vector<32xf32>
    %27 = vector.multi_reduction <add>, %26, %cst_16 [0] : vector<16x32xf32> to vector<32xf32>
    %28 = vector.shape_cast %27 : vector<32xf32> to vector<1x32xf32>
    %29 = vector.extract_strided_slice %22 {offsets = [32, 0], sizes = [16, 32], strides = [1, 1]} : vector<128x32xf32> to vector<16x32xf32>
    %cst_17 = arith.constant dense<0.000000e+00> : vector<32xf32>
    %30 = vector.multi_reduction <add>, %29, %cst_17 [0] : vector<16x32xf32> to vector<32xf32>
    %31 = vector.shape_cast %30 : vector<32xf32> to vector<1x32xf32>
    %32 = vector.extract_strided_slice %22 {offsets = [48, 0], sizes = [16, 32], strides = [1, 1]} : vector<128x32xf32> to vector<16x32xf32>
    %cst_18 = arith.constant dense<0.000000e+00> : vector<32xf32>
    %33 = vector.multi_reduction <add>, %32, %cst_18 [0] : vector<16x32xf32> to vector<32xf32>
    %34 = vector.shape_cast %33 : vector<32xf32> to vector<1x32xf32>
    %35 = vector.extract_strided_slice %22 {offsets = [64, 0], sizes = [16, 32], strides = [1, 1]} : vector<128x32xf32> to vector<16x32xf32>
    %cst_19 = arith.constant dense<0.000000e+00> : vector<32xf32>
    %36 = vector.multi_reduction <add>, %35, %cst_19 [0] : vector<16x32xf32> to vector<32xf32>
    %37 = vector.shape_cast %36 : vector<32xf32> to vector<1x32xf32>
    %38 = vector.extract_strided_slice %22 {offsets = [80, 0], sizes = [16, 32], strides = [1, 1]} : vector<128x32xf32> to vector<16x32xf32>
    %cst_20 = arith.constant dense<0.000000e+00> : vector<32xf32>
    %39 = vector.multi_reduction <add>, %38, %cst_20 [0] : vector<16x32xf32> to vector<32xf32>
    %40 = vector.shape_cast %39 : vector<32xf32> to vector<1x32xf32>
    %41 = vector.extract_strided_slice %22 {offsets = [96, 0], sizes = [16, 32], strides = [1, 1]} : vector<128x32xf32> to vector<16x32xf32>
    %cst_21 = arith.constant dense<0.000000e+00> : vector<32xf32>
    %42 = vector.multi_reduction <add>, %41, %cst_21 [0] : vector<16x32xf32> to vector<32xf32>
    %43 = vector.shape_cast %42 : vector<32xf32> to vector<1x32xf32>
    %44 = vector.extract_strided_slice %22 {offsets = [112, 0], sizes = [16, 32], strides = [1, 1]} : vector<128x32xf32> to vector<16x32xf32>
    %cst_22 = arith.constant dense<0.000000e+00> : vector<32xf32>
    %45 = vector.multi_reduction <add>, %44, %cst_22 [0] : vector<16x32xf32> to vector<32xf32>
    %46 = vector.shape_cast %45 : vector<32xf32> to vector<1x32xf32>
    %47 = tpu.concatenate %25, %28, %31, %34, %37, %40, %43, %46 in 0 : vector<1x32xf32>, vector<1x32xf32>, vector<1x32xf32>, vector<1x32xf32>, vector<1x32xf32>, vector<1x32xf32>, vector<1x32xf32>, vector<1x32xf32> -> vector<8x32xf32>
    %c32 = arith.constant 32 : index
    %c0_23 = arith.constant 0 : index
    %48 = vector.load %arg3[%c32, %c0_23] : memref<128x64xbf16, #tpu.memory_space<vmem>>, vector<32x64xbf16>
    %c16 = arith.constant 16 : index
    %c0_24 = arith.constant 0 : index
    %49 = vector.load %arg4[%c16, %c0_24] : memref<48x64xf32, #tpu.memory_space<vmem>>, vector<1x64xf32>
    %50 = arith.truncf %47 : vector<8x32xf32> to vector<8x32xbf16>
    %cst_25 = arith.constant dense<0.000000e+00> : vector<8x64xf32>
    %51 = tpu.matmul %50, %48, %cst_25 {dimension_numbers = #tpu.dot_dimension_numbers<[1], [0], [0], [1], [0, 0, 1, 1], [], []>} : vector<8x32xbf16>, vector<32x64xbf16>, vector<8x64xf32> -> vector<8x64xf32>
    %52 = vector.broadcast %49 : vector<1x64xf32> to vector<8x64xf32>
    %53 = arith.addf %51, %52 : vector<8x64xf32>
    %cst_26 = arith.constant 0.000000e+00 : f32
    %54 = vector.broadcast %cst_26 : f32 to vector<8x64xf32>
    %55 = arith.maximumf %53, %54 : vector<8x64xf32>
    %c64 = arith.constant 64 : index
    %c0_27 = arith.constant 0 : index
    %56 = vector.load %arg3[%c64, %c0_27] : memref<128x64xbf16, #tpu.memory_space<vmem>>, vector<64x32xbf16>
    %c24 = arith.constant 24 : index
    %c0_28 = arith.constant 0 : index
    %57 = vector.load %arg4[%c24, %c0_28] : memref<48x64xf32, #tpu.memory_space<vmem>>, vector<1x32xf32>
    %58 = arith.truncf %55 : vector<8x64xf32> to vector<8x64xbf16>
    %cst_29 = arith.constant dense<0.000000e+00> : vector<8x32xf32>
    %59 = tpu.matmul %58, %56, %cst_29 {dimension_numbers = #tpu.dot_dimension_numbers<[1], [0], [0], [1], [0, 0, 1, 1], [], []>} : vector<8x64xbf16>, vector<64x32xbf16>, vector<8x32xf32> -> vector<8x32xf32>
    %60 = vector.broadcast %57 : vector<1x32xf32> to vector<8x32xf32>
    %61 = arith.addf %59, %60 : vector<8x32xf32>
    %cst_30 = arith.constant 0.000000e+00 : f32
    %62 = vector.broadcast %cst_30 : f32 to vector<8x32xf32>
    %63 = arith.maximumf %61, %62 : vector<8x32xf32>
    %c32_31 = arith.constant 32 : index
    %c0_32 = arith.constant 0 : index
    %64 = vector.load %arg4[%c32_31, %c0_32] : memref<48x64xf32, #tpu.memory_space<vmem>>, vector<1x32xf32>
    %c40 = arith.constant 40 : index
    %c0_33 = arith.constant 0 : index
    %65 = vector.load %arg4[%c40, %c0_33] : memref<48x64xf32, #tpu.memory_space<vmem>>, vector<1x1xf32>
    %66 = vector.broadcast %64 : vector<1x32xf32> to vector<8x32xf32>
    %67 = arith.mulf %63, %66 : vector<8x32xf32>
    %cst_34 = arith.constant dense<0.000000e+00> : vector<8xf32>
    %68 = vector.multi_reduction <add>, %67, %cst_34 [1] : vector<8x32xf32> to vector<8xf32>
    %69 = vector.shape_cast %68 : vector<8xf32> to vector<8x1xf32>
    %70 = vector.broadcast %65 : vector<1x1xf32> to vector<8x1xf32>
    %71 = arith.addf %69, %70 : vector<8x1xf32>
    %c0_35 = arith.constant 0 : index
    %c0_36 = arith.constant 0 : index
    %c0_37 = arith.constant 0 : index
    %72 = vector.load %arg5[%c0_35, %c0_36, %c0_37] : memref<1x8x1xf32, #tpu.memory_space<vmem>>, vector<1x8x1xf32>
    %73 = vector.shape_cast %72 : vector<1x8x1xf32> to vector<8x1xf32>
    %74 = vector.shape_cast %71 : vector<8x1xf32> to vector<1x8x1xf32>
    tpu.vector_store %arg5[%c0_35, %c0_36, %c0_37], %74 {strides = array<i32>} : memref<1x8x1xf32, #tpu.memory_space<vmem>>, vector<1x8x1xf32>,
    return
  }
  func.func @transform_0(%arg0: i32) -> (i32, i32, i32) {
    %c0_i32 = arith.constant 0 : i32
    %c0_i32_0 = arith.constant 0 : i32
    %c0_i32_1 = arith.constant 0 : i32
    return %arg0, %c0_i32, %c0_i32_0 : i32, i32, i32
  }
  func.func @transform_1(%arg0: i32) -> (i32, i32, i32) {
    %c0_i32 = arith.constant 0 : i32
    %c0_i32_0 = arith.constant 0 : i32
    %c0_i32_1 = arith.constant 0 : i32
    return %arg0, %c0_i32, %c0_i32_0 : i32, i32, i32
  }
  func.func @transform_2(%arg0: i32) -> (i32, i32) {
    %c0_i32 = arith.constant 0 : i32
    %c0_i32_0 = arith.constant 0 : i32
    %c0_i32_1 = arith.constant 0 : i32
    return %c0_i32, %c0_i32_0 : i32, i32
  }
  func.func @transform_3(%arg0: i32) -> (i32, i32) {
    %c0_i32 = arith.constant 0 : i32
    %c0_i32_0 = arith.constant 0 : i32
    %c0_i32_1 = arith.constant 0 : i32
    return %c0_i32, %c0_i32_0 : i32, i32
  }
  func.func @transform_4(%arg0: i32) -> (i32, i32, i32) {
    %c0_i32 = arith.constant 0 : i32
    %c0_i32_0 = arith.constant 0 : i32
    %c0_i32_1 = arith.constant 0 : i32
    return %arg0, %c0_i32, %c0_i32_0 : i32, i32, i32
  }
}

</mosaic_0001>

<llo_original>
// kernel: tpu_custom_call.1
$region0: #{tpu_custom_call.1}
  #allocation0 [shape = 'u32[]', space=smem, size = 0x4, offset = 0x4, fixed_abs, tag = 'smem constant byte address 0x4 - core index']
  #allocation1 [shape = 'u32[72,128]{1,0:T(1,128)}', space=vmem, size = 0x9000, scoped, tag = 'internal scratch']
  %s0 = inlined_call_operand.vmem [shape: bf16[2,128,128], index: 0, kind: input, shape index: {}]
  %s1 = inlined_call_operand.vmem [shape: bf16[2,128,32], index: 1, kind: input, shape index: {}]
  %s2 = inlined_call_operand.vmem [shape: bf16[128,64], index: 2, kind: input, shape index: {}]
  %s3 = inlined_call_operand.vmem [shape: f32[48,64], index: 3, kind: input, shape index: {}]
  %s4 = inlined_call_operand.vmem [shape: f32[2,8,1], index: 4, kind: output, shape index: {}]
  %s5 = sld [smem:[#allocation0]]
  $region49: #{tpu_custom_call.1} parent=0
    _
  %s7 = ssub.s32 1, %s5
  %s8 = scalar_select 0, %s7, %s5
  loop: start=0, step=1, limit=4
  $region2: #{tpu_custom_call.1} parent=0 // loop_pre_header
    _
  $region3: #{tpu_custom_call.1} parent=0 // loop_header
    %s10 = sphi 0, %s14
    %p11 = scmp.ge.s32.totalorder %s10, 4
    %s20 = sphi 0, %s22
    %s23 = sphi 0, %s20
    %s24 = sphi 0, %s23
    %s40 = sphi 0, %s24
    %s46 = sphi 0, %s48
    %s49 = sphi 0, %s46
    %s50 = sphi 0, %s49
    %s66 = sphi 0, %s50
    %s70 = sphi 0, %s70
    %s72 = sphi 0, %s70
    %s73 = sphi 0, %s72
    %s87 = sphi 0, %s73
    %s91 = sphi 0, %s91
    %s93 = sphi 0, %s91
    %s94 = sphi 0, %s93
    %s108 = sphi 0, %s94
    %s114 = sphi 0, %s116
    %s117 = sphi 0, %s114
    %s118 = sphi 0, %s117
    %s134 = sphi 0, %s118
  $region4: #{tpu_custom_call.1} parent=0 // loop_header_branch
    %13 = sbr.rel (%p11) target = $region8
  $region5: #{tpu_custom_call.1} parent=0 // loop_body
    %s15 = ssub.s32 %s10, 1
    %s16 = ssub.s32 %s10, 2
    %s17 = sadd.s32 %s10, 1
    %s18 = ssub.s32 %s10, %s17
    %p19 = scmp.eq.s32.totalorder %s18, 0
    %s21 = sadd.s32 %s20, 1
    %s22 = scalar_select %p19, %s20, %s21
    %p25 = pneg %p19
    %p26 = scmp.eq.s32.totalorder %s10, 1
    %p27 = por %p25, %p26
    %p28 = scmp.ne.s32.totalorder %s20, %s23
    %p29 = scmp.eq.s32.totalorder %s10, 0
    %p30 = por %p28, %p29
    %p31 = scmp.ne.s32.totalorder %s20, %s23
    %p32 = scmp.eq.s32.totalorder %s15, 1
    %p33 = por %p31, %p32
    %p34 = scmp.ne.s32.totalorder %s23, %s24
    %p35 = scmp.eq.s32.totalorder %s15, 0
    %p36 = por %p34, %p35
    %p37 = scmp.ne.s32.totalorder %s23, %s24
    %p38 = scmp.eq.s32.totalorder %s16, 1
    %p39 = por %p37, %p38
    %p41 = scmp.ne.s32.totalorder %s24, %s40
    %p42 = scmp.eq.s32.totalorder %s16, 0
    %p43 = por %p41, %p42
    %s44 = ssub.s32 %s10, %s17
    %p45 = scmp.eq.s32.totalorder %s44, 0
    %s47 = sadd.s32 %s46, 1
    %s48 = scalar_select %p45, %s46, %s47
    %p51 = pneg %p45
    %p52 = scmp.eq.s32.totalorder %s10, 1
    %p53 = por %p51, %p52
    %p54 = scmp.ne.s32.totalorder %s46, %s49
    %p55 = scmp.eq.s32.totalorder %s10, 0
    %p56 = por %p54, %p55
    %p57 = scmp.ne.s32.totalorder %s46, %s49
    %p58 = scmp.eq.s32.totalorder %s15, 1
    %p59 = por %p57, %p58
    %p60 = scmp.ne.s32.totalorder %s49, %s50
    %p61 = scmp.eq.s32.totalorder %s15, 0
    %p62 = por %p60, %p61
    %p63 = scmp.ne.s32.totalorder %s49, %s50
    %p64 = scmp.eq.s32.totalorder %s16, 1
    %p65 = por %p63, %p64
    %p67 = scmp.ne.s32.totalorder %s50, %s66
    %p68 = scmp.eq.s32.totalorder %s16, 0
    %p69 = por %p67, %p68
    %s71 = sadd.s32 %s70, 1
    %p74 = scmp.eq.s32.totalorder %s10, 1
    %p75 = scmp.ne.s32.totalorder %s70, %s72
    %p76 = scmp.eq.s32.totalorder %s10, 0
    %p77 = por %p75, %p76
    %p78 = scmp.ne.s32.totalorder %s70, %s72
    %p79 = scmp.eq.s32.totalorder %s15, 1
    %p80 = por %p78, %p79
    %p81 = scmp.ne.s32.totalorder %s72, %s73
    %p82 = scmp.eq.s32.totalorder %s15, 0
    %p83 = por %p81, %p82
    %p84 = scmp.ne.s32.totalorder %s72, %s73
    %p85 = scmp.eq.s32.totalorder %s16, 1
    %p86 = por %p84, %p85
    %p88 = scmp.ne.s32.totalorder %s73, %s87
    %p89 = scmp.eq.s32.totalorder %s16, 0
    %p90 = por %p88, %p89
    %s92 = sadd.s32 %s91, 1
    %p95 = scmp.eq.s32.totalorder %s10, 1
    %p96 = scmp.ne.s32.totalorder %s91, %s93
    %p97 = scmp.eq.s32.totalorder %s10, 0
    %p98 = por %p96, %p97
    %p99 = scmp.ne.s32.totalorder %s91, %s93
    %p100 = scmp.eq.s32.totalorder %s15, 1
    %p101 = por %p99, %p100
    %p102 = scmp.ne.s32.totalorder %s93, %s94
    %p103 = scmp.eq.s32.totalorder %s15, 0
    %p104 = por %p102, %p103
    %p105 = scmp.ne.s32.totalorder %s93, %s94
    %p106 = scmp.eq.s32.totalorder %s16, 1
    %p107 = por %p105, %p106
    %p109 = scmp.ne.s32.totalorder %s94, %s108
    %p110 = scmp.eq.s32.totalorder %s16, 0
    %p111 = por %p109, %p110
    %s112 = ssub.s32 %s10, %s17
    %p113 = scmp.eq.s32.totalorder %s112, 0
    %s115 = sadd.s32 %s114, 1
    %s116 = scalar_select %p113, %s114, %s115
    %p119 = pneg %p113
    %p120 = scmp.eq.s32.totalorder %s10, 1
    %p121 = por %p119, %p120
    %p122 = scmp.ne.s32.totalorder %s114, %s117
    %p123 = scmp.eq.s32.totalorder %s10, 0
    %p124 = por %p122, %p123
    %p125 = scmp.ne.s32.totalorder %s114, %s117
    %p126 = scmp.eq.s32.totalorder %s15, 1
    %p127 = por %p125, %p126
    %p128 = scmp.ne.s32.totalorder %s117, %s118
    %p129 = scmp.eq.s32.totalorder %s15, 0
    %p130 = por %p128, %p129
    %p131 = scmp.ne.s32.totalorder %s117, %s118
    %p132 = scmp.eq.s32.totalorder %s16, 1
    %p133 = por %p131, %p132
    %p135 = scmp.ne.s32.totalorder %s118, %s134
    %p136 = scmp.eq.s32.totalorder %s16, 0
    %p137 = por %p135, %p136
    %p138 = scmp.le.s32.totalorder 1, %s10
    %p139 = scmp.lt.s32.totalorder %s10, 3
    %p140 = pnand %p138, %p139
    %p141 = pneg %p140
    // Predicated region
    $region9: #{tpu_custom_call.1} parent=5 // pred_check
      _
    $region10: #{tpu_custom_call.1} parent=5 // pred_check_branch
      %143 = sbr.rel (%p140) target = $region12
    $region11: #{tpu_custom_call.1} parent=5 // pred_region
      %s144 = ssub.s32 %s10, 1
      // Predicated region
      $region13: #{tpu_custom_call.1} parent=11 // pred_check
        %p145 = pneg %p83
      $region14: #{tpu_custom_call.1} parent=11 // pred_check_branch
        %147 = sbr.rel (%p145) target = $region16
      $region15: #{tpu_custom_call.1} parent=11 // pred_region
        _
      $region16: #{tpu_custom_call.1} parent=11 // pred_fallthru
        _
      // Predicated region
      $region17: #{tpu_custom_call.1} parent=11 // pred_check
        %p148 = pneg %p104
      $region18: #{tpu_custom_call.1} parent=11 // pred_check_branch
        %150 = sbr.rel (%p148) target = $region20
      $region19: #{tpu_custom_call.1} parent=11 // pred_region
        _
      $region20: #{tpu_custom_call.1} parent=11 // pred_fallthru
        _
    $region12: #{tpu_custom_call.1} parent=5 // pred_fallthru
      _
    %p151 = scmp.lt.s32.totalorder %s10, 2
    // Predicated region
    $region21: #{tpu_custom_call.1} parent=5 // pred_check
      %p152 = pneg %p151
    $region22: #{tpu_custom_call.1} parent=5 // pred_check_branch
      %154 = sbr.rel (%p152) target = $region24
    $region23: #{tpu_custom_call.1} parent=5 // pred_region
      // Predicated region
      $region25: #{tpu_custom_call.1} parent=23 // pred_check
        %p155 = pneg %p30
      $region26: #{tpu_custom_call.1} parent=23 // pred_check_branch
        %157 = sbr.rel (%p155) target = $region28
      $region27: #{tpu_custom_call.1} parent=23 // pred_region
        %p158 = scmp.lt.s32.totalorder %s10, 1
        %s159 = scalar_select %p158, %s10, 1
        %s160 = smul.addr %s159, 16
        %s161 = smul.addr %s160, 4
        %s162 = scalar_lea.vmem %s0, %s161
      $region28: #{tpu_custom_call.1} parent=23 // pred_fallthru
        _
      // Predicated region
      $region29: #{tpu_custom_call.1} parent=23 // pred_check
        %p163 = pneg %p56
      $region30: #{tpu_custom_call.1} parent=23 // pred_check_branch
        %165 = sbr.rel (%p163) target = $region32
      $region31: #{tpu_custom_call.1} parent=23 // pred_region
        %p166 = scmp.lt.s32.totalorder %s10, 1
        %s167 = scalar_select %p166, %s10, 1
        %s168 = smul.addr %s167, 16
        %s169 = smul.addr %s168, 4
        %s170 = scalar_lea.vmem %s1, %s169
      $region32: #{tpu_custom_call.1} parent=23 // pred_fallthru
        _
    $region24: #{tpu_custom_call.1} parent=5 // pred_fallthru
      _
    %p171 = scmp.le.s32.totalorder 1, %s10
    %p172 = scmp.lt.s32.totalorder %s10, 3
    %p173 = pnand %p171, %p172
    %p174 = pneg %p173
    // Predicated region
    $region33: #{tpu_custom_call.1} parent=5 // pred_check
      _
    $region34: #{tpu_custom_call.1} parent=5 // pred_check_branch
      %176 = sbr.rel (%p173) target = $region36
    $region35: #{tpu_custom_call.1} parent=5 // pred_region
      %s177 = ssub.s32 %s10, 1
      %p178 = scmp.lt.s32.totalorder %s15, 1
      %s179 = scalar_select %p178, %s15, 1
      %s180 = smul.addr %s179, 16
      %s181 = smul.addr %s180, 4
      %s182 = scalar_lea.vmem %s0, %s181
      %p183 = pneg %p36
      %p184 = pneg %p33
      %p185 = scmp.lt.s32.totalorder %s15, 1
      %s186 = scalar_select %p185, %s15, 1
      %s187 = smul.addr %s186, 16
      %s188 = smul.addr %s187, 4
      %s189 = scalar_lea.vmem %s1, %s188
      %p190 = pneg %p62
      %p191 = pneg %p59
      %p192 = pneg %p83
      %p193 = pneg %p80
      %p194 = pneg %p104
      %p195 = pneg %p101
      %p196 = pneg %p130
      %p197 = pneg %p127
      %p198 = scmp.lt.s32.totalorder %s15, 1
      %s199 = scalar_select %p198, %s15, 1
      %s200 = smul.addr %s199, 8
      %s201 = scalar_lea.vmem %s4, %s200
      %p202 = scmp.lt.s32.totalorder %s15, 1
      %s203 = scalar_select %p202, %s15, 1
      %s204 = smul.addr %s203, 16
      %s205 = smul.addr %s204, 4
      %s206 = scalar_lea.vmem %s0, %s205
      %p207 = scmp.lt.s32.totalorder %s15, 1
      %s208 = scalar_select %p207, %s15, 1
      %s209 = smul.addr %s208, 16
      %s210 = smul.addr %s209, 4
      %s211 = scalar_lea.vmem %s1, %s210
      %p212 = scmp.lt.s32.totalorder %s15, 1
      %s213 = scalar_select %p212, %s15, 1
      %s214 = smul.addr %s213, 8
      %s215 = scalar_lea.vmem %s4, %s214
      %v217 = vld [vmem:[%s206] sm:$0xf]
      %v218 = vld [vmem:[%s206 + $0x4] sm:$0xf]
      %v219 = vld [vmem:[%s206 + $0x8] sm:$0xf]
      %v220 = vld [vmem:[%s206 + $0xc] sm:$0xf]
      %v221 = vld [vmem:[%s206 + $0x10] sm:$0xf]
      %v222 = vld [vmem:[%s206 + $0x14] sm:$0xf]
      %v223 = vld [vmem:[%s206 + $0x18] sm:$0xf]
      %v224 = vld [vmem:[%s206 + $0x1c] sm:$0xf]
      %v225 = vld [vmem:[%s206 + $0x20] sm:$0xf]
      %v226 = vld [vmem:[%s206 + $0x24] sm:$0xf]
      %v227 = vld [vmem:[%s206 + $0x28] sm:$0xf]
      %v228 = vld [vmem:[%s206 + $0x2c] sm:$0xf]
      %v229 = vld [vmem:[%s206 + $0x30] sm:$0xf]
      %v230 = vld [vmem:[%s206 + $0x34] sm:$0xf]
      %v231 = vld [vmem:[%s206 + $0x38] sm:$0xf]
      %v232 = vld [vmem:[%s206 + $0x3c] sm:$0xf]
      %v233 = vld [vmem:[%s211] sm:$0xf]
      %v234 = vld [vmem:[%s211 + $0x4] sm:$0xf]
      %v235 = vld [vmem:[%s211 + $0x8] sm:$0xf]
      %v236 = vld [vmem:[%s211 + $0xc] sm:$0xf]
      %v237 = vld [vmem:[%s211 + $0x10] sm:$0xf]
      %v238 = vld [vmem:[%s211 + $0x14] sm:$0xf]
      %v239 = vld [vmem:[%s211 + $0x18] sm:$0xf]
      %v240 = vld [vmem:[%s211 + $0x1c] sm:$0xf]
      %v241 = vld [vmem:[%s211 + $0x20] sm:$0xf]
      %v242 = vld [vmem:[%s211 + $0x24] sm:$0xf]
      %v243 = vld [vmem:[%s211 + $0x28] sm:$0xf]
      %v244 = vld [vmem:[%s211 + $0x2c] sm:$0xf]
      %v245 = vld [vmem:[%s211 + $0x30] sm:$0xf]
      %v246 = vld [vmem:[%s211 + $0x34] sm:$0xf]
      %v247 = vld [vmem:[%s211 + $0x38] sm:$0xf]
      %v248 = vld [vmem:[%s211 + $0x3c] sm:$0xf]
      %v249 = vld [vmem:[%s3 + $0x8] sm:$0x1]
      %v250 = vperm.slane %v249, 0
      %v267 = vunpack.c.l.b16 %v217
      %v268 = vunpack.c.l.b16 %v218
      %v269 = vunpack.c.l.b16 %v219
      %v270 = vunpack.c.l.b16 %v220
      %v271 = vunpack.c.l.b16 %v221
      %v272 = vunpack.c.l.b16 %v222
      %v273 = vunpack.c.l.b16 %v223
      %v274 = vunpack.c.l.b16 %v224
      %v275 = vunpack.c.l.b16 %v225
      %v276 = vunpack.c.l.b16 %v226
      %v277 = vunpack.c.l.b16 %v227
      %v278 = vunpack.c.l.b16 %v228
      %v279 = vunpack.c.l.b16 %v229
      %v280 = vunpack.c.l.b16 %v230
      %v281 = vunpack.c.l.b16 %v231
      %v282 = vunpack.c.l.b16 %v232
      %v283 = vpack.c.b16 %v268, %v267
      %v284 = vpack.c.b16 %v270, %v269
      %v285 = vpack.c.b16 %v272, %v271
      %v286 = vpack.c.b16 %v274, %v273
      %v287 = vpack.c.b16 %v276, %v275
      %v288 = vpack.c.b16 %v278, %v277
      %v289 = vpack.c.b16 %v280, %v279
      %v290 = vpack.c.b16 %v282, %v281
      %v315 = vunpack.c.l.b16 %v233
      %v316 = vunpack.c.l.b16 %v234
      %v317 = vunpack.c.l.b16 %v235
      %v318 = vunpack.c.l.b16 %v236
      %v319 = vunpack.c.l.b16 %v237
      %v320 = vunpack.c.l.b16 %v238
      %v321 = vunpack.c.l.b16 %v239
      %v322 = vunpack.c.l.b16 %v240
      %v323 = vunpack.c.l.b16 %v241
      %v324 = vunpack.c.l.b16 %v242
      %v325 = vunpack.c.l.b16 %v243
      %v326 = vunpack.c.l.b16 %v244
      %v327 = vunpack.c.l.b16 %v245
      %v328 = vunpack.c.l.b16 %v246
      %v329 = vunpack.c.l.b16 %v247
      %v330 = vunpack.c.l.b16 %v248
      %v331 = vpack.c.b16 %v316, %v315
      %v332 = vpack.c.b16 %v318, %v317
      %v333 = vpack.c.b16 %v320, %v319
      %v334 = vpack.c.b16 %v322, %v321
      %v335 = vpack.c.b16 %v324, %v323
      %v336 = vpack.c.b16 %v326, %v325
      %v337 = vpack.c.b16 %v328, %v327
      %v338 = vpack.c.b16 %v330, %v329
      %347 = vmatpush.bf16.msra.mxu0 %v338
      %348 = vmatpush.bf16.msra.mxu0 %v337
      %349 = vmatpush.bf16.msra.mxu0 %v336
      %350 = vmatpush.bf16.msra.mxu0 %v335
      %351 = vmatpush.bf16.msra.mxu0 %v334
      %352 = vmatpush.bf16.msra.mxu0 %v333
      %353 = vmatpush.bf16.msra.mxu0 %v332
      %354 = vmatpush.bf16.msra.mxu0 %v331
      %355 = vmatmul.bf16.gmra.mxu0 %v283
      %v356 = vpop.f32.mrf.mxu0
      %v357 = vadd.f32 %v250, %v356
      %v358 = vpop.f32.mrf.mxu0
      %v359 = vadd.f32 %v250, %v358
      %360 = vmatmul.bf16.gmra.mxu0 %v284
      %v361 = vpop.f32.mrf.mxu0
      %v362 = vadd.f32 %v250, %v361
      %v363 = vpop.f32.mrf.mxu0
      %v364 = vadd.f32 %v250, %v363
      %365 = vmatmul.bf16.gmra.mxu0 %v285
      %v366 = vpop.f32.mrf.mxu0
      %v367 = vadd.f32 %v250, %v366
      %v368 = vpop.f32.mrf.mxu0
      %v369 = vadd.f32 %v250, %v368
      %370 = vmatmul.bf16.gmra.mxu0 %v286
      %v371 = vpop.f32.mrf.mxu0
      %v372 = vadd.f32 %v250, %v371
      %v373 = vpop.f32.mrf.mxu0
      %v374 = vadd.f32 %v250, %v373
      %375 = vmatmul.bf16.gmra.mxu0 %v287
      %v376 = vpop.f32.mrf.mxu0
      %v377 = vadd.f32 %v250, %v376
      %v378 = vpop.f32.mrf.mxu0
      %v379 = vadd.f32 %v250, %v378
      %380 = vmatmul.bf16.gmra.mxu0 %v288
      %v381 = vpop.f32.mrf.mxu0
      %v382 = vadd.f32 %v250, %v381
      %v383 = vpop.f32.mrf.mxu0
      %v384 = vadd.f32 %v250, %v383
      %385 = vmatmul.bf16.gmra.mxu0 %v289
      %v386 = vpop.f32.mrf.mxu0
      %v387 = vadd.f32 %v250, %v386
      %v388 = vpop.f32.mrf.mxu0
      %v389 = vadd.f32 %v250, %v388
      %390 = vmatmul.bf16.gmra.mxu0 %v290
      %v391 = vpop.f32.mrf.mxu0
      %v392 = vadd.f32 %v250, %v391
      %v393 = vpop.f32.mrf.mxu0
      %v394 = vadd.f32 %v250, %v393
      %395 = vdwg.mxu0
      %v396 = vmax.f32 %v357, 0.0
      %v397 = vmax.f32 %v359, 0.0
      %v398 = vmax.f32 %v362, 0.0
      %v399 = vmax.f32 %v364, 0.0
      %v400 = vmax.f32 %v367, 0.0
      %v401 = vmax.f32 %v369, 0.0
      %v402 = vmax.f32 %v372, 0.0
      %v403 = vmax.f32 %v374, 0.0
      %v404 = vmax.f32 %v377, 0.0
      %v405 = vmax.f32 %v379, 0.0
      %v406 = vmax.f32 %v382, 0.0
      %v407 = vmax.f32 %v384, 0.0
      %v408 = vmax.f32 %v387, 0.0
      %v409 = vmax.f32 %v389, 0.0
      %v410 = vmax.f32 %v392, 0.0
      %v411 = vmax.f32 %v394, 0.0
      %v412 = vpack.c.bf16 %v397, %v396
      %v413 = vpack.c.bf16 %v399, %v398
      %v414 = vpack.c.bf16 %v401, %v400
      %v415 = vpack.c.bf16 %v403, %v402
      %v416 = vpack.c.bf16 %v405, %v404
      %v417 = vpack.c.bf16 %v407, %v406
      %v418 = vpack.c.bf16 %v409, %v408
      %v419 = vpack.c.bf16 %v411, %v410
      %v420 = vld [vmem:[%s2] sm:$0xf]
      %v421 = vld [vmem:[%s2 + $0x4] sm:$0xf]
      %v422 = vld [vmem:[%s2 + $0x8] sm:$0xf]
      %v423 = vld [vmem:[%s2 + $0xc] sm:$0xf]
      %v424 = vld [vmem:[%s3] sm:$0x1]
      %v425 = vperm.slane %v424, 0
      %v430 = vunpack.c.l.b16 %v420
      %v431 = vunpack.c.l.b16 %v421
      %v432 = vunpack.c.l.b16 %v422
      %v433 = vunpack.c.l.b16 %v423
      %v434 = vpack.c.b16 %v431, %v430
      %v435 = vpack.c.b16 %v433, %v432
      %vm438 = vcmask 261120
      %v440 = vsel %vm438, %v412, 0
      %v443 = vsel %vm438, %v413, 0
      %v446 = vsel %vm438, %v414, 0
      %v449 = vsel %vm438, %v415, 0
      %v452 = vsel %vm438, %v416, 0
      %v455 = vsel %vm438, %v417, 0
      %v458 = vsel %vm438, %v418, 0
      %v461 = vsel %vm438, %v419, 0
      %463 = vmatpush.bf16.msra.mxu0 0
      %464 = vmatpush.bf16.msra.mxu0 0
      %465 = vmatpush.bf16.msra.mxu0 0
      %466 = vmatpush.bf16.msra.mxu0 0
      %467 = vmatpush.bf16.msra.mxu0 0
      %468 = vmatpush.bf16.msra.mxu0 0
      %469 = vmatpush.bf16.msra.mxu0 %v435
      %470 = vmatpush.bf16.msra.mxu0 %v434
      %471 = vmatmul.bf16.gmra.mxu0 %v440
      %v472 = vpop.f32.mrf.mxu0
      %v473 = vadd.f32 %v425, %v472
      %v474 = vpop.f32.mrf.mxu0
      %v475 = vadd.f32 %v425, %v474
      %476 = vmatmul.bf16.gmra.mxu0 %v443
      %v477 = vpop.f32.mrf.mxu0
      %v478 = vadd.f32 %v425, %v477
      %v479 = vpop.f32.mrf.mxu0
      %v480 = vadd.f32 %v425, %v479
      %481 = vmatmul.bf16.gmra.mxu0 %v446
      %v482 = vpop.f32.mrf.mxu0
      %v483 = vadd.f32 %v425, %v482
      %v484 = vpop.f32.mrf.mxu0
      %v485 = vadd.f32 %v425, %v484
      %486 = vmatmul.bf16.gmra.mxu0 %v449
      %v487 = vpop.f32.mrf.mxu0
      %v488 = vadd.f32 %v425, %v487
      %v489 = vpop.f32.mrf.mxu0
      %v490 = vadd.f32 %v425, %v489
      %491 = vmatmul.bf16.gmra.mxu0 %v452
      %v492 = vpop.f32.mrf.mxu0
      %v493 = vadd.f32 %v425, %v492
      %v494 = vpop.f32.mrf.mxu0
      %v495 = vadd.f32 %v425, %v494
      %496 = vmatmul.bf16.gmra.mxu0 %v455
      %v497 = vpop.f32.mrf.mxu0
      %v498 = vadd.f32 %v425, %v497
      %v499 = vpop.f32.mrf.mxu0
      %v500 = vadd.f32 %v425, %v499
      %501 = vmatmul.bf16.gmra.mxu0 %v458
      %v502 = vpop.f32.mrf.mxu0
      %v503 = vadd.f32 %v425, %v502
      %v504 = vpop.f32.mrf.mxu0
      %v505 = vadd.f32 %v425, %v504
      %506 = vmatmul.bf16.gmra.mxu0 %v461
      %v507 = vpop.f32.mrf.mxu0
      %v508 = vadd.f32 %v425, %v507
      %v509 = vpop.f32.mrf.mxu0
      %v510 = vadd.f32 %v425, %v509
      %511 = vdwg.mxu0
      %v512 = vpack.c.bf16 %v475, %v473
      %v513 = vpack.c.bf16 %v480, %v478
      %v514 = vpack.c.bf16 %v485, %v483
      %v515 = vpack.c.bf16 %v490, %v488
      %v516 = vpack.c.bf16 %v495, %v493
      %v517 = vpack.c.bf16 %v500, %v498
      %v518 = vpack.c.bf16 %v505, %v503
      %v519 = vpack.c.bf16 %v510, %v508
      %v520 = vld [vmem:[%s3 + $0x9] sm:$0x1]
      %v521 = vperm.slane %v520, 0
      %522 = vmatpush.bf16.msra.mxu0 %v519
      %523 = vmatpush.bf16.msra.mxu0 %v518
      %524 = vmatpush.bf16.msra.mxu0 %v517
      %525 = vmatpush.bf16.msra.mxu0 %v516
      %526 = vmatpush.bf16.msra.mxu0 %v515
      %527 = vmatpush.bf16.msra.mxu0 %v514
      %528 = vmatpush.bf16.msra.mxu0 %v513
      %529 = vmatpush.bf16.msra.mxu0 %v512
      %530 = vmatmul.bf16.gmra.mxu0 %v283
      %v531 = vpop.f32.mrf.mxu0
      %v532 = vadd.f32 %v521, %v531
      %v533 = vpop.f32.mrf.mxu0
      %v534 = vadd.f32 %v521, %v533
      %535 = vmatmul.bf16.gmra.mxu0 %v284
      %v536 = vpop.f32.mrf.mxu0
      %v537 = vadd.f32 %v521, %v536
      %v538 = vpop.f32.mrf.mxu0
      %v539 = vadd.f32 %v521, %v538
      %540 = vmatmul.bf16.gmra.mxu0 %v285
      %v541 = vpop.f32.mrf.mxu0
      %v542 = vadd.f32 %v521, %v541
      %v543 = vpop.f32.mrf.mxu0
      %v544 = vadd.f32 %v521, %v543
      %545 = vmatmul.bf16.gmra.mxu0 %v286
      %v546 = vpop.f32.mrf.mxu0
      %v547 = vadd.f32 %v521, %v546
      %v548 = vpop.f32.mrf.mxu0
      %v549 = vadd.f32 %v521, %v548
      %550 = vmatmul.bf16.gmra.mxu0 %v287
      %v551 = vpop.f32.mrf.mxu0
      %v552 = vadd.f32 %v521, %v551
      %v553 = vpop.f32.mrf.mxu0
      %v554 = vadd.f32 %v521, %v553
      %555 = vmatmul.bf16.gmra.mxu0 %v288
      %v556 = vpop.f32.mrf.mxu0
      %v557 = vadd.f32 %v521, %v556
      %v558 = vpop.f32.mrf.mxu0
      %v559 = vadd.f32 %v521, %v558
      %560 = vmatmul.bf16.gmra.mxu0 %v289
      %v561 = vpop.f32.mrf.mxu0
      %v562 = vadd.f32 %v521, %v561
      %v563 = vpop.f32.mrf.mxu0
      %v564 = vadd.f32 %v521, %v563
      %565 = vmatmul.bf16.gmra.mxu0 %v290
      %v566 = vpop.f32.mrf.mxu0
      %v567 = vadd.f32 %v521, %v566
      %v568 = vpop.f32.mrf.mxu0
      %v569 = vadd.f32 %v521, %v568
      %570 = vdwg.mxu0
      %v571 = vmax.f32 %v532, 0.0
      %v572 = vmax.f32 %v534, 0.0
      %v573 = vmax.f32 %v537, 0.0
      %v574 = vmax.f32 %v539, 0.0
      %v575 = vmax.f32 %v542, 0.0
      %v576 = vmax.f32 %v544, 0.0
      %v577 = vmax.f32 %v547, 0.0
      %v578 = vmax.f32 %v549, 0.0
      %v579 = vmax.f32 %v552, 0.0
      %v580 = vmax.f32 %v554, 0.0
      %v581 = vmax.f32 %v557, 0.0
      %v582 = vmax.f32 %v559, 0.0
      %v583 = vmax.f32 %v562, 0.0
      %v584 = vmax.f32 %v564, 0.0
      %v585 = vmax.f32 %v567, 0.0
      %v586 = vmax.f32 %v569, 0.0
      %v587 = vsel %vm438, %v571, 0.0
      %v588 = vsel %vm438, %v572, 0.0
      %v589 = vadd.f32 %v587, %v588
      %v590 = vrot.slane %v589, 4
      %v591 = vadd.f32 %v589, %v590
      %v592 = vrot.slane %v591, 2
      %v593 = vadd.f32 %v591, %v592
      %v594 = vrot.slane %v593, 1
      %v595 = vadd.f32 %v593, %v594
      %v596 = vsel %vm438, %v573, 0.0
      %v597 = vsel %vm438, %v574, 0.0
      %v598 = vadd.f32 %v596, %v597
      %v599 = vrot.slane %v598, 4
      %v600 = vadd.f32 %v598, %v599
      %v601 = vrot.slane %v600, 2
      %v602 = vadd.f32 %v600, %v601
      %v603 = vrot.slane %v602, 1
      %v604 = vadd.f32 %v602, %v603
      %v605 = vsel %vm438, %v575, 0.0
      %v606 = vsel %vm438, %v576, 0.0
      %v607 = vadd.f32 %v605, %v606
      %v608 = vrot.slane %v607, 4
      %v609 = vadd.f32 %v607, %v608
      %v610 = vrot.slane %v609, 2
      %v611 = vadd.f32 %v609, %v610
      %v612 = vrot.slane %v611, 1
      %v613 = vadd.f32 %v611, %v612
      %v614 = vsel %vm438, %v577, 0.0
      %v615 = vsel %vm438, %v578, 0.0
      %v616 = vadd.f32 %v614, %v615
      %v617 = vrot.slane %v616, 4
      %v618 = vadd.f32 %v616, %v617
      %v619 = vrot.slane %v618, 2
      %v620 = vadd.f32 %v618, %v619
      %v621 = vrot.slane %v620, 1
      %v622 = vadd.f32 %v620, %v621
      %v623 = vsel %vm438, %v579, 0.0
      %v624 = vsel %vm438, %v580, 0.0
      %v625 = vadd.f32 %v623, %v624
      %v626 = vrot.slane %v625, 4
      %v627 = vadd.f32 %v625, %v626
      %v628 = vrot.slane %v627, 2
      %v629 = vadd.f32 %v627, %v628
      %v630 = vrot.slane %v629, 1
      %v631 = vadd.f32 %v629, %v630
      %v632 = vsel %vm438, %v581, 0.0
      %v633 = vsel %vm438, %v582, 0.0
      %v634 = vadd.f32 %v632, %v633
      %v635 = vrot.slane %v634, 4
      %v636 = vadd.f32 %v634, %v635
      %v637 = vrot.slane %v636, 2
      %v638 = vadd.f32 %v636, %v637
      %v639 = vrot.slane %v638, 1
      %v640 = vadd.f32 %v638, %v639
      %v641 = vsel %vm438, %v583, 0.0
      %v642 = vsel %vm438, %v584, 0.0
      %v643 = vadd.f32 %v641, %v642
      %v644 = vrot.slane %v643, 4
      %v645 = vadd.f32 %v643, %v644
      %v646 = vrot.slane %v645, 2
      %v647 = vadd.f32 %v645, %v646
      %v648 = vrot.slane %v647, 1
      %v649 = vadd.f32 %v647, %v648
      %v650 = vsel %vm438, %v585, 0.0
      %v651 = vsel %vm438, %v586, 0.0
      %v652 = vadd.f32 %v650, %v651
      %v653 = vrot.slane %v652, 4
      %v654 = vadd.f32 %v652, %v653
      %v655 = vrot.slane %v654, 2
      %v656 = vadd.f32 %v654, %v655
      %v657 = vrot.slane %v656, 1
      %v658 = vadd.f32 %v656, %v657
      %vm659 = vcmask 1040384
      %v660 = vsel %vm659, %v595, %v604
      %vm661 = vcmask 1041408
      %v662 = vsel %vm661, %v660, %v613
      %vm663 = vcmask 1042432
      %v664 = vsel %vm663, %v662, %v622
      %vm665 = vcmask 1043456
      %v666 = vsel %vm665, %v664, %v631
      %vm667 = vcmask 1044480
      %v668 = vsel %vm667, %v666, %v640
      %vm669 = vcmask 1045504
      %v670 = vsel %vm669, %v668, %v649
      %vm671 = vcmask 1046528
      %v672 = vsel %vm671, %v670, %v658
      %v673 = vld [vmem:[%s2 + $0x10] sm:$0xf]
      %v674 = vld [vmem:[%s2 + $0x14] sm:$0xf]
      %v675 = vld [vmem:[%s2 + $0x18] sm:$0xf]
      %v676 = vld [vmem:[%s2 + $0x1c] sm:$0xf]
      %v677 = vld [vmem:[%s3 + $0x10] sm:$0x1]
      %v678 = vpack.c.bf16 %v672, %v672
      %v679 = vperm.slane %v677, 0
      %v684 = vunpack.c.l.b16 %v673
      %v685 = vunpack.c.l.b16 %v674
      %v686 = vunpack.c.l.b16 %v675
      %v687 = vunpack.c.l.b16 %v676
      %v688 = vpack.c.b16 %v685, %v684
      %v689 = vpack.c.b16 %v687, %v686
      %v693 = vsel %vm438, %v678, 0
      %695 = vmatpush.bf16.msra.mxu0 0
      %696 = vmatpush.bf16.msra.mxu0 0
      %697 = vmatpush.bf16.msra.mxu0 0
      %698 = vmatpush.bf16.msra.mxu0 0
      %699 = vmatpush.bf16.msra.mxu0 0
      %700 = vmatpush.bf16.msra.mxu0 0
      %701 = vmatpush.bf16.msra.mxu0 %v689
      %702 = vmatpush.bf16.msra.mxu0 %v688
      %703 = vmatmul.bf16.gmra.mxu0 %v693
      %v704 = vpop.f32.mrf.mxu0
      %v705 = vadd.f32 %v679, %v704
      %v706 = vpop.f32.mrf.mxu0
      %707 = vdwg.mxu0
      %v708 = vmax.f32 %v705, 0.0
      %v709 = vld [vmem:[%s2 + $0x20] sm:$0xf]
      %v710 = vld [vmem:[%s2 + $0x24] sm:$0xf]
      %v711 = vld [vmem:[%s2 + $0x28] sm:$0xf]
      %v712 = vld [vmem:[%s2 + $0x2c] sm:$0xf]
      %v713 = vld [vmem:[%s2 + $0x30] sm:$0xf]
      %v714 = vld [vmem:[%s2 + $0x34] sm:$0xf]
      %v715 = vld [vmem:[%s2 + $0x38] sm:$0xf]
      %v716 = vld [vmem:[%s2 + $0x3c] sm:$0xf]
      %v717 = vld [vmem:[%s3 + $0x18] sm:$0x1]
      %v718 = vpack.c.bf16 %v708, %v708
      %v719 = vperm.slane %v717, 0
      %v728 = vunpack.c.l.b16 %v709
      %v729 = vunpack.c.l.b16 %v710
      %v730 = vunpack.c.l.b16 %v711
      %v731 = vunpack.c.l.b16 %v712
      %v732 = vunpack.c.l.b16 %v713
      %v733 = vunpack.c.l.b16 %v714
      %v734 = vunpack.c.l.b16 %v715
      %v735 = vunpack.c.l.b16 %v716
      %v736 = vpack.c.b16 %v729, %v728
      %v737 = vpack.c.b16 %v731, %v730
      %v738 = vpack.c.b16 %v733, %v732
      %v739 = vpack.c.b16 %v735, %v734
      %vm744 = vcmask 523264
      %v746 = vsel %vm744, %v718, 0
      %748 = vmatpush.bf16.msra.mxu0 0
      %749 = vmatpush.bf16.msra.mxu0 0
      %750 = vmatpush.bf16.msra.mxu0 0
      %751 = vmatpush.bf16.msra.mxu0 0
      %752 = vmatpush.bf16.msra.mxu0 %v739
      %753 = vmatpush.bf16.msra.mxu0 %v738
      %754 = vmatpush.bf16.msra.mxu0 %v737
      %755 = vmatpush.bf16.msra.mxu0 %v736
      %756 = vmatmul.bf16.gmra.mxu0 %v746
      %v757 = vpop.f32.mrf.mxu0
      %v758 = vadd.f32 %v719, %v757
      %v759 = vpop.f32.mrf.mxu0
      %760 = vdwg.mxu0
      %v761 = vmax.f32 %v758, 0.0
      %v762 = vld [vmem:[%s3 + $0x20] sm:$0x1]
      %v763 = vld [vmem:[%s3 + $0x28] sm:$0x1]
      %v764 = vperm.slane %v762, 0
      %v765 = vmul.f32 %v761, %v764
      %v766 = vsel %vm438, %v765, 0.0
      %767 = vadd.xlane.f32.xlu0 %v766
      %v768 = vpop.xlane.xlu0 %767
      %v769 = vperm.slane %v763, 0
      %v770 = vadd.f32 %v768, %v769
      %vm771 = vcmask 7168
      %772 = vst.msk [vmem:[%s215] sm:$0xff] %vm771, %v770
      %p773 = scmp.lt.s32.totalorder %s15, 1
      %s774 = scalar_select %p773, %s15, 1
      %s775 = smul.addr %s774, 8
      %s776 = scalar_lea.vmem %s4, %s775
      // Predicated region
      $region37: #{tpu_custom_call.1} parent=35 // pred_check
        %p777 = pneg %p127
      $region38: #{tpu_custom_call.1} parent=35 // pred_check_branch
        %779 = sbr.rel (%p777) target = $region40
      $region39: #{tpu_custom_call.1} parent=35 // pred_region
        _
      $region40: #{tpu_custom_call.1} parent=35 // pred_fallthru
        _
    $region36: #{tpu_custom_call.1} parent=5 // pred_fallthru
      _
    %p780 = scmp.le.s32.totalorder 2, %s10
    // Predicated region
    $region41: #{tpu_custom_call.1} parent=5 // pred_check
      %p781 = pneg %p780
    $region42: #{tpu_custom_call.1} parent=5 // pred_check_branch
      %783 = sbr.rel (%p781) target = $region44
    $region43: #{tpu_custom_call.1} parent=5 // pred_region
      %s784 = ssub.s32 %s10, 2
      // Predicated region
      $region45: #{tpu_custom_call.1} parent=43 // pred_check
        %p785 = pneg %p133
      $region46: #{tpu_custom_call.1} parent=43 // pred_check_branch
        %787 = sbr.rel (%p785) target = $region48
      $region47: #{tpu_custom_call.1} parent=43 // pred_region
        %p788 = scmp.lt.s32.totalorder %s16, 1
        %s789 = scalar_select %p788, %s16, 1
        %s790 = smul.addr %s789, 8
        %s791 = scalar_lea.vmem %s4, %s790
      $region48: #{tpu_custom_call.1} parent=43 // pred_fallthru
        _
    $region44: #{tpu_custom_call.1} parent=5 // pred_fallthru
      _
  $region6: #{tpu_custom_call.1} parent=0 // loop_footer
    %s14 = sadd.s32 1, %s10
  $region7: #{tpu_custom_call.1} parent=0 // loop_footer_branch
    %9 = sbr.rel target = $region3
  $region8: #{tpu_custom_call.1} parent=0 // loop_exit
    _

</llo_original>
